<compile_context>
chip_gen: v7x
topology: tpu7x:2x2x1
jax: 0.10.0
libtpu: 0.0.40
codegen_flags: <defaults>
</compile_context>

<pallas_src>
import functools

import jax
import jax.numpy as jnp
from jax.experimental import pallas as pl
from jax.experimental.pallas import tpu as pltpu


def _cal_soft_kernel(x_ref, wf_ref, bf_ref, vr_ref, s_ref, o_ref, *, transpose_out):
    # x_ref:  (TB, N, C)   tokens (compute dtype: f32 or bf16)
    # wf_ref: (C, C)       W_fused = (scale*W_cls^T) @ W_tok   (compute dtype)
    # bf_ref: (1, C)       b_fused = (scale*b_cls) @ W_tok     (f32)
    # vr_ref: (1, C)       v_row   = (scale*W_cls^T) @ b_tok   (f32)
    # s_ref:  (1, 1)       s       = (scale*b_cls) . b_tok     (f32)
    # o_ref:  (TB, N) or (N, TB)  sigmoid mask (cls column dropped in wrapper)
    x = x_ref[...]                                        # (TB, N, C)
    cls_tok = x[:, 0, :]                                  # (TB, C)

    # Single fused projection on the MXU, f32 accumulation.
    p = jnp.dot(cls_tok, wf_ref[...],
                preferred_element_type=jnp.float32) + bf_ref[...]            # (TB, C) f32

    # Per-batch scalar bias = cls_tok . v_row + s   (tiny VPU multiply + reduce).
    bias = jnp.sum(cls_tok.astype(jnp.float32) * vr_ref[...],
                   axis=-1, keepdims=True) + s_ref[...]                      # (TB, 1) f32

    # Contraction over C on the VPU: multiply in the compute dtype (bf16 on
    # v6e/v7x halves vreg pressure), accumulate the lane reduce in f32.
    # TODO(synk): on v7x, if the XLU lane-reduce becomes the binding slot, switch
    # this to a batched lax.dot_general on the otherwise-idle MXU.
    scores = jnp.sum(p.astype(x.dtype)[:, None, :] * x,
                     axis=-1, dtype=jnp.float32)                             # (TB, N) f32
    mask = jax.nn.sigmoid(scores + bias)                                     # (TB, N)

    if transpose_out:
        o_ref[...] = mask.T.astype(o_ref.dtype)           # (N, TB) lane-dense store
    else:
        o_ref[...] = mask.astype(o_ref.dtype)             # (TB, N)


def _pick_block_b(B, N, C, itemsize, vmem_budget_bytes=12 * 1024 * 1024):
    """Largest batch tile that (a) divides B, (b) keeps double-buffered x/out
    blocks plus resident weights inside the VMEM budget (safe on v5e's 16 MiB
    scoped default and v7x's 64 MiB physical VMEM), and (c) leaves >=2 grid
    steps when possible so the 'parallel' axis shards across v7x's 2 TCs."""
    weight_bytes = 2 * (C * C * itemsize + 2 * C * 4 + 4)   # double-buffered consts

    def fits(tb):
        x_bytes = 2 * tb * N * C * itemsize                 # double-buffered input
        o_bytes = 2 * tb * N * 4                            # double-buffered f32 out
        return weight_bytes + x_bytes + o_bytes <= vmem_budget_bytes

    divisors = [tb for tb in (1024, 512, 256, 128, 64, 32, 16, 8) if B % tb == 0]
    for tb in divisors:                                     # biggest tile, grid >= 2
        if 2 * tb <= B and fits(tb):
            return tb
    for tb in divisors:                                     # biggest tile that fits
        if fits(tb):
            return tb
    # Fallback for tiny / oddly-sized B: whole batch in one step.
    # TODO(synk): odd B with huge N*C could still exceed VMEM; pad B upstream.
    return B


def cal_soft_pallas(x, w_cls, b_cls, w_tok, b_tok, *,
                    compute_dtype=None, block_b=None, x_buffers=None):
    """x: (B, N, C).  Weights follow nn.Linear convention: W is (out, in).
    Returns mask_soft: (B, N-1) float32."""
    B, N, C = x.shape
    scale = float(C) ** (-0.5)

    # Use bf16 compute only when x is already bf16 upstream (a standalone
    # f32->bf16 pass over HBM would eat the bandwidth win); otherwise f32.
    if compute_dtype is None:
        compute_dtype = jnp.bfloat16 if x.dtype == jnp.bfloat16 else jnp.float32
    itemsize = jnp.dtype(compute_dtype).itemsize

    # --- Host-side weight fusion (tiny (C,C) ops; fuse into surrounding program) ---
    #   attn_j = (scaled cls_q) . token(x_j)
    #          = cls_tok @ W_fused . x_j + b_fused . x_j + cls_tok . v_row + s
    wct = w_cls.astype(jnp.float32).T * scale                       # scale * W_cls^T
    w_tok32 = w_tok.astype(jnp.float32)
    b_tok32 = b_tok.astype(jnp.float32)
    bcs = b_cls.astype(jnp.float32) * scale                         # scale * b_cls

    w_fused = (wct @ w_tok32).astype(compute_dtype)                 # (C, C)
    b_fused = (bcs @ w_tok32).reshape(1, C).astype(jnp.float32)     # (1, C)
    v_row = (wct @ b_tok32).reshape(1, C).astype(jnp.float32)       # (1, C)
    s_val = (bcs @ b_tok32).reshape(1, 1).astype(jnp.float32)       # (1, 1)
    xc = x.astype(compute_dtype)

    # --- Tiling ---
    tb = _pick_block_b(B, N, C, itemsize) if block_b is None else block_b
    assert B % tb == 0, (B, tb)
    grid = (B // tb,)

    # Lane-dense output layout when N is narrower than a vreg row: store (N, B)
    # so batch sits on the lane axis (unmasked vst).  Only valid/useful when the
    # batch tile is a multiple of 128 lanes or covers the whole batch.
    transpose_out = (N < 128) and (tb % 128 == 0 or tb == B)

    # --- VMEM budget / compiler params ---
    vmem_needed = (2 * tb * N * C * itemsize + 2 * tb * N * 4
                   + 2 * (C * C * itemsize + 2 * C * 4 + 4))
    vmem_limit = int(min(max(vmem_needed + (4 << 20), 16 << 20), 64 << 20))

    cost = pl.CostEstimate(
        flops=2 * B * C * C + 2 * B * N * C + 2 * B * C,
        transcendentals=B * N,
        bytes_accessed=B * N * C * itemsize + C * C * itemsize + 3 * C * 4 + B * N * 4,
    )

    x_spec_kwargs = {}
    if x_buffers is not None:        # deeper pipelining; sweep only if DMA exposed
        x_spec_kwargs["pipeline_mode"] = pl.Buffered(x_buffers)
    x_spec = pl.BlockSpec((tb, N, C), lambda b: (b, 0, 0), **x_spec_kwargs)

    if transpose_out:
        out_shape = jax.ShapeDtypeStruct((N, B), jnp.float32)
        out_spec = pl.BlockSpec((N, tb), lambda b: (0, b))
    else:
        out_shape = jax.ShapeDtypeStruct((B, N), jnp.float32)
        out_spec = pl.BlockSpec((tb, N), lambda b: (b, 0))

    kernel = functools.partial(_cal_soft_kernel, transpose_out=transpose_out)

    out = pl.pallas_call(
        kernel,
        out_shape=out_shape,
        grid_spec=pltpu.PrefetchScalarGridSpec(
            num_scalar_prefetch=0,
            grid=grid,
            in_specs=[
                x_spec,                                      # x, batch-tiled
                pl.BlockSpec((C, C), lambda b: (0, 0)),      # W_fused
                pl.BlockSpec((1, C), lambda b: (0, 0)),      # b_fused
                pl.BlockSpec((1, C), lambda b: (0, 0)),      # v_row
                pl.BlockSpec((1, 1), lambda b: (0, 0)),      # s
            ],
            out_specs=out_spec,
        ),
        compiler_params=pltpu.CompilerParams(
            dimension_semantics=("parallel",),
            vmem_limit_bytes=vmem_limit),
        cost_estimate=cost,
    )(xc, w_fused, b_fused, v_row, s_val)

    # Drop the cls column with a plain XLA slice (no lane-offset slice in-kernel).
    if transpose_out:
        return out[1:, :].T          # (B, N-1)
    return out[:, 1:]                # (B, N-1)


def cal_soft_ref(x, w_cls, b_cls, w_tok, b_tok):
    """Plain-JAX reference mirroring the PyTorch forward."""
    B, N, C = x.shape
    scale = float(C) ** (-0.5)
    cls_tok = x[:, :1]                                       # (B, 1, C)
    other = x[:, 1:]                                         # (B, N-1, C)
    cls_q = cls_tok @ w_cls.T + b_cls                        # (B, 1, C)
    other_k = other @ w_tok.T + b_tok                        # (B, N-1, C)
    attn = (cls_q @ jnp.swapaxes(other_k, -1, -2)) * scale   # (B, 1, N-1)
    return jax.nn.sigmoid(attn[:, 0, :])                     # (B, N-1)


if __name__ == "__main__":
    N, C = 8, 32  # seq=8 (1 cls + 7 tokens), dim=32

    key = jax.random.PRNGKey(0)
    kx1, kx2, kx3, kwc, kbc, kwt, kbt = jax.random.split(key, 7)

    # Deterministic synthetic Linear params (shape matches nn.Linear(dim, dim)).
    w_cls = jax.random.normal(kwc, (C, C), dtype=jnp.float32) * (C ** -0.5)
    b_cls = jax.random.normal(kbc, (C,), dtype=jnp.float32) * 0.1
    w_tok = jax.random.normal(kwt, (C, C), dtype=jnp.float32) * (C ** -0.5)
    b_tok = jax.random.normal(kbt, (C,), dtype=jnp.float32) * 0.1

    ok = True

    # Case 1: tiny batch -> single grid step, lane-dense (transposed) output path.
    B1 = 2
    x1 = jax.random.normal(kx1, (B1, N, C), dtype=jnp.float32)
    out1 = jax.block_until_ready(cal_soft_pallas(x1, w_cls, b_cls, w_tok, b_tok))
    ref1 = cal_soft_ref(x1, w_cls, b_cls, w_tok, b_tok)
    ok &= out1.shape == (B1, N - 1)
    ok &= bool(jnp.allclose(out1, ref1, atol=1e-4, rtol=1e-4))

    # Case 2: multi-step parallel grid (tb=8, grid=2), standard (tb, N) layout, f32.
    B2 = 16
    x2 = jax.random.normal(kx2, (B2, N, C), dtype=jnp.float32)
    out2 = jax.block_until_ready(cal_soft_pallas(x2, w_cls, b_cls, w_tok, b_tok))
    ref2 = cal_soft_ref(x2, w_cls, b_cls, w_tok, b_tok)
    ok &= out2.shape == (B2, N - 1)
    ok &= bool(jnp.allclose(out2, ref2, atol=1e-4, rtol=1e-4))

    # Case 3: larger batch with bf16 activations (x already bf16 upstream):
    # tb=128 -> lane-dense transposed output, 2 grid steps (both TCs on v7x).
    B3 = 256
    x3 = jax.random.normal(kx3, (B3, N, C), dtype=jnp.float32).astype(jnp.bfloat16)
    out3 = jax.block_until_ready(cal_soft_pallas(x3, w_cls, b_cls, w_tok, b_tok))
    ref3 = cal_soft_ref(x3.astype(jnp.float32), w_cls, b_cls, w_tok, b_tok)
    ok &= out3.shape == (B3, N - 1)
    ok &= bool(jnp.allclose(out3, ref3, atol=3e-2, rtol=3e-2))

    assert ok, "mismatch vs reference"
    print("KERNEL_OK")
</pallas_src>

<mosaic_0001>
module attributes {stable_mosaic.version = 11 : i64} {
  func.func @_cal_soft_kernel(%arg0: i32, %arg1: memref<2x8x32xf32, #tpu.memory_space<vmem>>, %arg2: memref<32x32xf32, #tpu.memory_space<vmem>>, %arg3: memref<1x32xf32, #tpu.memory_space<vmem>>, %arg4: memref<1x32xf32, #tpu.memory_space<vmem>>, %arg5: memref<1x1xf32, #tpu.memory_space<vmem>>, %arg6: memref<8x2xf32, #tpu.memory_space<vmem>>) attributes {dimension_semantics = [#tpu.dimension_semantics<parallel>], iteration_bounds = array<i64: 1>, scalar_prefetch = 0 : i64, scratch_operands = 0 : i64, tpu.core_type = #tpu.core_type<tc>, window_params = [{transform_indices = @transform_0, window_bounds = array<i64: 2, 8, 32>}, {pipeline_mode = #tpu.pipeline_mode<synchronous>, transform_indices = @transform_1, window_bounds = array<i64: 32, 32>}, {pipeline_mode = #tpu.pipeline_mode<synchronous>, transform_indices = @transform_2, window_bounds = array<i64: 1, 32>}, {pipeline_mode = #tpu.pipeline_mode<synchronous>, transform_indices = @transform_3, window_bounds = array<i64: 1, 32>}, {pipeline_mode = #tpu.pipeline_mode<synchronous>, transform_indices = @transform_4, window_bounds = array<i64: 1, 1>}, {transform_indices = @transform_5, window_bounds = array<i64: 8, 2>}]} {
    %c0 = arith.constant 0 : index
    %c0_0 = arith.constant 0 : index
    %c0_1 = arith.constant 0 : index
    %0 = vector.load %arg1[%c0, %c0_0, %c0_1] : memref<2x8x32xf32, #tpu.memory_space<vmem>>, vector<2x8x32xf32>
    %1 = vector.extract_strided_slice %0 {offsets = [0, 0, 0], sizes = [2, 1, 32], strides = [1, 1, 1]} : vector<2x8x32xf32> to vector<2x1x32xf32>
    %2 = vector.shape_cast %1 : vector<2x1x32xf32> to vector<2x32xf32>
    %c0_2 = arith.constant 0 : index
    %c0_3 = arith.constant 0 : index
    %3 = vector.load %arg2[%c0_2, %c0_3] : memref<32x32xf32, #tpu.memory_space<vmem>>, vector<32x32xf32>
    %cst = arith.constant dense<0.000000e+00> : vector<2x32xf32>
    %4 = tpu.matmul %2, %3, %cst {dimension_numbers = #tpu.dot_dimension_numbers<[1], [0], [0], [1], [0, 0, 1, 1], [], []>} : vector<2x32xf32>, vector<32x32xf32>, vector<2x32xf32> -> vector<2x32xf32>
    %c0_4 = arith.constant 0 : index
    %c0_5 = arith.constant 0 : index
    %5 = vector.load %arg3[%c0_4, %c0_5] : memref<1x32xf32, #tpu.memory_space<vmem>>, vector<1x32xf32>
    %6 = vector.broadcast %5 : vector<1x32xf32> to vector<2x32xf32>
    %7 = arith.addf %4, %6 : vector<2x32xf32>
    %c0_6 = arith.constant 0 : index
    %c0_7 = arith.constant 0 : index
    %8 = vector.load %arg4[%c0_6, %c0_7] : memref<1x32xf32, #tpu.memory_space<vmem>>, vector<1x32xf32>
    %9 = vector.broadcast %8 : vector<1x32xf32> to vector<2x32xf32>
    %10 = arith.mulf %2, %9 : vector<2x32xf32>
    %cst_8 = arith.constant dense<0.000000e+00> : vector<2xf32>
    %11 = vector.multi_reduction <add>, %10, %cst_8 [1] : vector<2x32xf32> to vector<2xf32>
    %12 = vector.shape_cast %11 : vector<2xf32> to vector<2x1xf32>
    %c0_9 = arith.constant 0 : index
    %c0_10 = arith.constant 0 : index
    %13 = vector.load %arg5[%c0_9, %c0_10] : memref<1x1xf32, #tpu.memory_space<vmem>>, vector<1x1xf32>
    %14 = vector.broadcast %13 : vector<1x1xf32> to vector<2x1xf32>
    %15 = arith.addf %12, %14 : vector<2x1xf32>
    %16 = vector.shape_cast %7 : vector<2x32xf32> to vector<2x1x32xf32>
    %17 = vector.broadcast %16 : vector<2x1x32xf32> to vector<2x8x32xf32>
    %18 = arith.mulf %17, %0 : vector<2x8x32xf32>
    %cst_11 = arith.constant dense<0.000000e+00> : vector<2x8xf32>
    %19 = vector.multi_reduction <add>, %18, %cst_11 [2] : vector<2x8x32xf32> to vector<2x8xf32>
    %20 = vector.broadcast %15 : vector<2x1xf32> to vector<2x8xf32>
    %21 = arith.addf %19, %20 : vector<2x8xf32>
    %22 = arith.negf %21 : vector<2x8xf32>
    %23 = math.exp %22 : vector<2x8xf32>
    %cst_12 = arith.constant 1.000000e+00 : f32
    %24 = vector.broadcast %cst_12 : f32 to vector<2x8xf32>
    %25 = arith.addf %24, %23 : vector<2x8xf32>
    %26 = arith.divf %24, %25 : vector<2x8xf32>
    %27 = tpu.transpose %26, [1, 0] : vector<2x8xf32> -> vector<8x2xf32>
    %c0_13 = arith.constant 0 : index
    %c0_14 = arith.constant 0 : index
    %28 = vector.load %arg6[%c0_13, %c0_14] : memref<8x2xf32, #tpu.memory_space<vmem>>, vector<8x2xf32>
    tpu.vector_store %arg6[%c0_13, %c0_14], %27 {strides = array<i32>} : memref<8x2xf32, #tpu.memory_space<vmem>>, vector<8x2xf32>,
    return
  }
  func.func @transform_0(%arg0: i32) -> (i32, i32, i32) {
    %c0_i32 = arith.constant 0 : i32
    %c0_i32_0 = arith.constant 0 : i32
    %c0_i32_1 = arith.constant 0 : i32
    return %arg0, %c0_i32, %c0_i32_0 : i32, i32, i32
  }
  func.func @transform_1(%arg0: i32) -> (i32, i32) {
    %c0_i32 = arith.constant 0 : i32
    %c0_i32_0 = arith.constant 0 : i32
    %c0_i32_1 = arith.constant 0 : i32
    return %c0_i32, %c0_i32_0 : i32, i32
  }
  func.func @transform_2(%arg0: i32) -> (i32, i32) {
    %c0_i32 = arith.constant 0 : i32
    %c0_i32_0 = arith.constant 0 : i32
    %c0_i32_1 = arith.constant 0 : i32
    return %c0_i32, %c0_i32_0 : i32, i32
  }
  func.func @transform_3(%arg0: i32) -> (i32, i32) {
    %c0_i32 = arith.constant 0 : i32
    %c0_i32_0 = arith.constant 0 : i32
    %c0_i32_1 = arith.constant 0 : i32
    return %c0_i32, %c0_i32_0 : i32, i32
  }
  func.func @transform_4(%arg0: i32) -> (i32, i32) {
    %c0_i32 = arith.constant 0 : i32
    %c0_i32_0 = arith.constant 0 : i32
    %c0_i32_1 = arith.constant 0 : i32
    return %c0_i32, %c0_i32_0 : i32, i32
  }
  func.func @transform_5(%arg0: i32) -> (i32, i32) {
    %c0_i32 = arith.constant 0 : i32
    %c0_i32_0 = arith.constant 0 : i32
    return %c0_i32, %arg0 : i32, i32
  }
}

</mosaic_0001>

<llo_original>
// kernel: tpu_custom_call.1
$region0: #{tpu_custom_call.1}
  #allocation0 [shape = 'u32[]', space=smem, size = 0x4, offset = 0x4, fixed_abs, tag = 'smem constant byte address 0x4 - core index']
  #allocation1 [shape = 'u32[144,128]{1,0:T(1,128)}', space=vmem, size = 0x12000, scoped, tag = 'internal scratch']
  #allocation2 [shape = 'f32[1,1]{1,0:T(1,128)S(1)}', space=vmem, size = 0x200, scoped, tag = 'scoped memory for tpu_custom_call.1']
  %s0 = inlined_call_operand.hbm [shape: f32[2,8,32], index: 0, kind: input, shape index: {}]
  %s1 = inlined_call_operand.hbm [shape: f32[32,32], index: 1, kind: input, shape index: {}]
  %s2 = inlined_call_operand.vmem [shape: f32[1,32], index: 2, kind: input, shape index: {}]
  %s3 = inlined_call_operand.vmem [shape: f32[1,32], index: 3, kind: input, shape index: {}]
  %s4 = inlined_call_operand.<no memory space> [shape: f32[1,1], index: 4, kind: input, shape index: {}]
  %s5 = inlined_call_operand.vmem [shape: f32[8,2], index: 5, kind: output, shape index: {}]
  %s6 = sld [smem:[#allocation0]]
  $region38: #{tpu_custom_call.1} parent=0
    _
  %s8 = ssub.s32 1, %s6
  %s9 = scalar_select 0, %s8, %s6
  %v10 = vstv %s4
  %11 = vst [vmem:[#allocation2] sm:$0x1] %v10
  $region1: #{tpu_custom_call.1} parent=0
    #allocation3 [shape = 'u8[8192]{0}', space=vmem, size = 0x2000, scoped, tag = 'input window, operand 0, single buffered']
    #allocation4 [shape = 's32[1]{0}', space=sflag, size = 0x4, scoped, tag = 'scoped memory for tpu_custom_call.1']
    #allocation5 [shape = 'u8[16384]{0}', space=vmem, size = 0x4000, scoped, tag = 'input window, operand 1, single buffered']
    #allocation6 [shape = 's32[1]{0}', space=sflag, size = 0x4, scoped, tag = 'scoped memory for tpu_custom_call.1']
    %12 = vsyncpa [#allocation4], 0
    %13 = vsyncpa [#allocation6], 0
    // Predicated region
    $region2: #{tpu_custom_call.1} parent=1 // pred_check
      _
    $region3: #{tpu_custom_call.1} parent=1 // pred_check_branch
      %15 = sbr.rel (0) target = $region5
    $region4: #{tpu_custom_call.1} parent=1 // pred_region
      %s17 = ssub.s32 256, 256
      %18 = vsyncadd [#allocation4], %s17
      %s19 = sshll.u32 [#allocation3], 4
      %s20 = int_to_ptr.vmem [resolvable:$true] %s19
      %25 = dma.hbm_to_vmem [thread:$0]  %s0, 256, %s20, [#allocation4], 128, 128, 8
    $region5: #{tpu_custom_call.1} parent=1 // pred_fallthru
      _
    // Predicated region
    $region6: #{tpu_custom_call.1} parent=1 // pred_check
      _
    $region7: #{tpu_custom_call.1} parent=1 // pred_check_branch
      %27 = sbr.rel (0) target = $region9
    $region8: #{tpu_custom_call.1} parent=1 // pred_region
      %s29 = ssub.s32 512, 512
      %30 = vsyncadd [#allocation6], %s29
      %s31 = sshll.u32 [#allocation5], 4
      %s32 = int_to_ptr.vmem [resolvable:$true] %s31
      %37 = dma.hbm_to_vmem [thread:$0]  %s1, 512, %s32, [#allocation6], 128, 128, 8
    $region9: #{tpu_custom_call.1} parent=1 // pred_fallthru
      _
    // Predicated region
    $region10: #{tpu_custom_call.1} parent=1 // pred_check
      _
    $region11: #{tpu_custom_call.1} parent=1 // pred_check_branch
      %39 = sbr.rel (0) target = $region13
    $region12: #{tpu_custom_call.1} parent=1 // pred_region
      _
    $region13: #{tpu_custom_call.1} parent=1 // pred_fallthru
      _
    // Predicated region
    $region14: #{tpu_custom_call.1} parent=1 // pred_check
      _
    $region15: #{tpu_custom_call.1} parent=1 // pred_check_branch
      %41 = sbr.rel (0) target = $region17
    $region16: #{tpu_custom_call.1} parent=1 // pred_region
      _
    $region17: #{tpu_custom_call.1} parent=1 // pred_fallthru
      _
    // Predicated region
    $region18: #{tpu_custom_call.1} parent=1 // pred_check
      _
    $region19: #{tpu_custom_call.1} parent=1 // pred_check_branch
      %43 = sbr.rel (0) target = $region21
    $region20: #{tpu_custom_call.1} parent=1 // pred_region
      _
    $region21: #{tpu_custom_call.1} parent=1 // pred_fallthru
      _
    // Predicated region
    $region22: #{tpu_custom_call.1} parent=1 // pred_check
      _
    $region23: #{tpu_custom_call.1} parent=1 // pred_check_branch
      %45 = sbr.rel (0) target = $region25
    $region24: #{tpu_custom_call.1} parent=1 // pred_region
      %46 = dma.done [#allocation4], 256
    $region25: #{tpu_custom_call.1} parent=1 // pred_fallthru
      _
    // Predicated region
    $region26: #{tpu_custom_call.1} parent=1 // pred_check
      _
    $region27: #{tpu_custom_call.1} parent=1 // pred_check_branch
      %48 = sbr.rel (0) target = $region29
    $region28: #{tpu_custom_call.1} parent=1 // pred_region
      %49 = dma.done [#allocation6], 512
    $region29: #{tpu_custom_call.1} parent=1 // pred_fallthru
      _
    %v50 = vld [vmem:[#allocation3] sm:$0xff]
    %v51 = vld [vmem:[#allocation3 + $0x8] sm:$0xff]
    %v52 = vld [vmem:[#allocation5] sm:$0xff]
    %v53 = vld [vmem:[#allocation5 + $0x8] sm:$0xff]
    %v54 = vld [vmem:[#allocation5 + $0x10] sm:$0xff]
    %v55 = vld [vmem:[#allocation5 + $0x18] sm:$0xff]
    %v56 = vld [vmem:[%s2] sm:$0x1]
    %v58 = vlaneseq
    %v59 = vshrl.u32 %v58, 7
    %v60 = vsub.s32 0, %v59
    %v61 = vrot.slane %v56, %v60
    %v65 = vrot.slane %v51, 7
    %vm66 = vcmask 1041409
    %v67 = vsel %vm66, %v65, %v50
    %vm68 = vcmask 261120
    %v69 = vsel %vm68, %v67, 0
    %71 = vmatprep.subr.mxu0 0.0
    %72 = vmatpush1.msra.mxu0 %v52
    %73 = vmatprep.subr.mxu0 0.0
    %74 = vmatpush1.msra.mxu0 %v53
    %75 = vmatprep.subr.mxu0 0.0
    %76 = vmatpush1.msra.mxu0 %v54
    %77 = vmatprep.subr.mxu0 0.0
    %78 = vmatpush1.msra.mxu0 %v55
    %79 = vmatprep.subr.mxu0 0.0
    %80 = vmatpush1.msra.mxu0 0.0
    %81 = vmatprep.subr.mxu0 0.0
    %82 = vmatpush1.msra.mxu0 0.0
    %83 = vmatprep.subr.mxu0 0.0
    %84 = vmatpush1.msra.mxu0 0.0
    %85 = vmatprep.subr.mxu0 0.0
    %86 = vmatpush1.msra.mxu0 0.0
    %87 = vmatprep.subr.mxu0 0.0
    %88 = vmatpush1.msra.mxu0 0.0
    %89 = vmatprep.subr.mxu0 0.0
    %90 = vmatpush1.msra.mxu0 0.0
    %91 = vmatprep.subr.mxu0 0.0
    %92 = vmatpush1.msra.mxu0 0.0
    %93 = vmatprep.subr.mxu0 0.0
    %94 = vmatpush1.msra.mxu0 0.0
    %95 = vmatprep.subr.mxu0 0.0
    %96 = vmatpush1.msra.mxu0 0.0
    %97 = vmatprep.subr.mxu0 0.0
    %98 = vmatpush1.msra.mxu0 0.0
    %99 = vmatprep.subr.mxu0 0.0
    %100 = vmatpush1.msra.mxu0 0.0
    %101 = vmatprep.subr.mxu0 0.0
    %102 = vmatpush1.msra.mxu0 0.0
    %103 = vmatprep.subr.mxu0 0.0
    %104 = vmatpush1.msra.mxu0 0.0
    %105 = vmatprep.subr.mxu0 0.0
    %106 = vmatpush1.msra.mxu0 0.0
    %107 = vmatprep.subr.mxu0 0.0
    %108 = vmatpush1.msra.mxu0 0.0
    %109 = vmatprep.subr.mxu0 0.0
    %110 = vmatpush1.msra.mxu0 0.0
    %111 = vmatprep.subr.mxu0 0.0
    %112 = vmatpush1.msra.mxu0 0.0
    %113 = vmatprep.subr.mxu0 0.0
    %114 = vmatpush1.msra.mxu0 0.0
    %115 = vmatprep.subr.mxu0 0.0
    %116 = vmatpush1.msra.mxu0 0.0
    %117 = vmatprep.subr.mxu0 0.0
    %118 = vmatpush1.msra.mxu0 0.0
    %119 = vmatprep.subr.mxu0 0.0
    %120 = vmatpush1.msra.mxu0 0.0
    %121 = vmatprep.subr.mxu0 0.0
    %122 = vmatpush1.msra.mxu0 0.0
    %123 = vmatprep.subr.mxu0 0.0
    %124 = vmatpush1.msra.mxu0 0.0
    %125 = vmatprep.subr.mxu0 0.0
    %126 = vmatpush1.msra.mxu0 0.0
    %127 = vmatprep.subr.mxu0 0.0
    %128 = vmatpush1.msra.mxu0 0.0
    %129 = vmatprep.subr.mxu0 0.0
    %130 = vmatpush1.msra.mxu0 0.0
    %131 = vmatprep.subr.mxu0 0.0
    %132 = vmatpush1.msra.mxu0 0.0
    %133 = vmatprep.subr.mxu0 0.0
    %134 = vmatpush1.msra.mxu0 0.0
    %135 = vmatprep.mubr.f32.mxu0 0.0
    %136 = vmatmul.mubr.f32.gmra.mrb[0].mxu0 %v69
    %v137 = vpop.f32.mrb[0].mxu0
    %v138 = vadd.f32 %v61, %v137
    %v139 = vpop.f32.mrb[0].mxu0
    %140 = vdwg.mxu0
    %v141 = vld [vmem:[%s3] sm:$0x1]
    %v143 = vlaneseq
    %v144 = vshrl.u32 %v143, 7
    %v145 = vsub.s32 0, %v144
    %v146 = vrot.slane %v141, %v145
    %v148 = vmul.f32 %v50, %v146
    %v149 = vmul.f32 %v51, %v146
    %v152 = vrot.slane %v149, 7
    %v153 = vsel %vm66, %v152, %v148
    %vm155 = vcmask 254976
    %v156 = vsel %vm155, %v153, 0.0
    %157 = vadd.xlane.f32.xlu0 %v156
    %v158 = vpop.xlane.xlu0 %157
    %v159 = vld [vmem:[#allocation2] sm:$0x1]
    %v161 = vlaneseq
    %v162 = vshrl.u32 %v161, 7
    %v163 = vsub.s32 0, %v162
    %v164 = vrot.slane %v159, %v163
    %v166 = vadd.f32 %v158, %v164
    %v169 = vunpack.c.l.s4 1966171168
    %v170 = vunpack.c.0.s8 %v169
    %v171 = vlaneseq
    %v172 = vshrl.u32 %v171, 7
    %v173 = vsub.s32 %v170, %v172
    %v174 = vrot.slane %v138, %v173
    %v175 = vcombine.high %v174, %v174
    %v177 = vunpack.c.l.s4 1966171168
    %v178 = vunpack.c.0.s8 %v177
    %v179 = vlaneseq
    %v180 = vshrl.u32 %v179, 7
    %v181 = vsub.s32 %v178, %v180
    %v182 = vrot.slane %v174, %v181
    %v184 = vunpack.c.l.s4 1966171168
    %v185 = vunpack.c.0.s8 %v184
    %v186 = vlaneseq
    %v187 = vshrl.u32 %v186, 7
    %v188 = vsub.s32 %v185, %v187
    %v189 = vrot.slane %v175, %v188
    %v190 = vlaneseq
    %v191 = vshrl.u32 %v190, 7
    %v192 = vsub.s32 0, %v191
    %v193 = vrot.slane %v182, %v192
    %v194 = vlaneseq
    %v195 = vshrl.u32 %v194, 7
    %v196 = vsub.s32 0, %v195
    %v197 = vrot.slane %v189, %v196
    %v200 = vmul.f32 %v193, %v50
    %v201 = vmul.f32 %v197, %v51
    %v202 = vsel %vm68, %v200, 0.0
    %203 = vadd.xlane.f32.xlu0 %v202
    %v204 = vpop.xlane.xlu0 %203
    %v205 = vsel %vm68, %v201, 0.0
    %206 = vadd.xlane.f32.xlu0 %v205
    %v207 = vpop.xlane.xlu0 %206
    %209 = vset.pattern.permute.xlu0 0
    %210 = vperm.xlu0 %209, %v166
    %v211 = vpop.permute.xlu0 %210
    %v212 = vlaneseq
    %v213 = vshrl.u32 %v212, 7
    %v214 = vsub.s32 0, %v213
    %v215 = vrot.slane %v211, %v214
    %v216 = vlaneseq
    %v217 = vshrl.u32 %v216, 7
    %v218 = vsub.s32 1, %v217
    %v219 = vrot.slane %v211, %v218
    %v222 = vadd.f32 %v204, %v215
    %v223 = vadd.f32 %v207, %v219
    %v224 = vxor.u32 %v222, 2147483648
    %v225 = vxor.u32 %v223, 2147483648
    %v226 = vmul.f32 %v224, 1.442695
    %v227 = vpow.pop %v226
    %v228 = vmul.f32 %v225, 1.442695
    %v229 = vpow.pop %v228
    %v230 = vadd.f32 %v227, 1.0
    %v231 = vadd.f32 %v229, 1.0
    %v232 = vrcp.pop %v230
    %v233 = vmul.f32 1.0, %v232
    %v234 = vrcp.pop %v231
    %v235 = vmul.f32 1.0, %v234
    %238 = vset.pattern.permute.xlu0 0
    %239 = vperm.xlu0 %238, %v233
    %v240 = vpop.permute.xlu0 %239
    %241 = vset.pattern.permute.xlu0 0
    %242 = vperm.xlu0 %241, %v235
    %v243 = vpop.permute.xlu0 %242
    %v244 = vlaneseq
    %v245 = vand.u32 %v244, 127
    %v246 = vlaneseq
    %v247 = vshrl.u32 %v246, 7
    %v248 = vsub.s32 %v245, %v247
    %v249 = vrot.slane %v240, %v248
    %v250 = vlaneseq
    %v251 = vshrl.u32 %v250, 7
    %v252 = vsub.s32 %v245, %v251
    %v253 = vrot.slane %v243, %v252
    %v254 = vsel %vm66, %v253, %v249
    %256 = vxpose.xlu0.b32.start [1/16] %v254, 128
    %257 = vxpose.xlu0.b32.cont [2/16] 0.0, 128
    %258 = vxpose.xlu0.b32.cont [3/16] 0.0, 128
    %259 = vxpose.xlu0.b32.cont [4/16] 0.0, 128
    %260 = vxpose.xlu0.b32.cont [5/16] 0.0, 128
    %261 = vxpose.xlu0.b32.cont [6/16] 0.0, 128
    %262 = vxpose.xlu0.b32.cont [7/16] 0.0, 128
    %263 = vxpose.xlu0.b32.cont [8/16] 0.0, 128
    %264 = vxpose.xlu0.b32.cont [9/16] 0.0, 128
    %265 = vxpose.xlu0.b32.cont [10/16] 0.0, 128
    %266 = vxpose.xlu0.b32.cont [11/16] 0.0, 128
    %267 = vxpose.xlu0.b32.cont [12/16] 0.0, 128
    %268 = vxpose.xlu0.b32.cont [13/16] 0.0, 128
    %269 = vxpose.xlu0.b32.cont [14/16] 0.0, 128
    %270 = vxpose.xlu0.b32.cont [15/16] 0.0, 128
    %271 = vxpose.xlu0.b32.end [16/16] 0.0, 128
    %v272 = vpop.trf.xlu0
    %v273 = vpop.trf.xlu0
    %v274 = vpop.trf.xlu0
    %v275 = vpop.trf.xlu0
    %v276 = vpop.trf.xlu0
    %v277 = vpop.trf.xlu0
    %v278 = vpop.trf.xlu0
    %v279 = vpop.trf.xlu0
    %v280 = vpop.trf.xlu0
    %v281 = vpop.trf.xlu0
    %v282 = vpop.trf.xlu0
    %v283 = vpop.trf.xlu0
    %v284 = vpop.trf.xlu0
    %v285 = vpop.trf.xlu0
    %v286 = vpop.trf.xlu0
    %v287 = vpop.trf.xlu0
    %vm288 = vcmask 15360
    %289 = vst.msk [vmem:[%s5] sm:$0xff] %vm288, %v272
    // Predicated region
    $region30: #{tpu_custom_call.1} parent=1 // pred_check
      _
    $region31: #{tpu_custom_call.1} parent=1 // pred_check_branch
      %291 = sbr.rel (0) target = $region33
    $region32: #{tpu_custom_call.1} parent=1 // pred_region
      _
    $region33: #{tpu_custom_call.1} parent=1 // pred_fallthru
      _
    // Predicated region
    $region34: #{tpu_custom_call.1} parent=1 // pred_check
      _
    $region35: #{tpu_custom_call.1} parent=1 // pred_check_branch
      %293 = sbr.rel (0) target = $region37
    $region36: #{tpu_custom_call.1} parent=1 // pred_region
      _
    $region37: #{tpu_custom_call.1} parent=1 // pred_fallthru
      _
    %294 = vsyncpa [#allocation4], 1
    %295 = vsyncpa [#allocation6], 1

</llo_original>
